<compile_context>
chip_gen: v6e
topology: v6e:2x2x1
jax: 0.10.0
libtpu: 0.0.40
codegen_flags: <defaults>
</compile_context>

<pallas_src>
import jax
import jax.numpy as jnp
from jax.experimental import pallas as pl
from jax.experimental.pallas import tpu as pltpu


def _round_up(a, b):
    return (a + b - 1) // b * b


def _vmem_capacity_bytes():
    """Physical VMEM per core; conservative 64 MiB (v7x) fallback."""
    try:
        cap = getattr(pltpu.get_tpu_info(), "vmem_capacity_bytes", None)
        if cap:
            return int(cap)
    except Exception:
        pass
    return 64 << 20


def _select_tiling(n, c, hw, itemsize, per_buf_bytes):
    """Pick (TN, thw). Prefer a single full-HW step; TN multiple of 8."""
    thw_full = _round_up(hw, 128)
    full_row_bytes = c * thw_full * itemsize
    if 8 * full_row_bytes <= per_buf_bytes:
        # Single HW step: contiguous row DMA, no reduction-axis accumulation.
        thw = thw_full
        tn_cap = max(8, (per_buf_bytes // full_row_bytes) // 8 * 8)
        tn = min(_round_up(n, 8), tn_cap)
        # Keep >= 2 N tiles when N allows it (v7x has 2 TensorCores), as long
        # as each block stays comfortably in the multi-MiB range.
        if tn >= n and n > 8:
            tn_half = _round_up((n + 1) // 2, 8)
            if tn_half * full_row_bytes >= (2 << 20):
                tn = min(tn, tn_half)
    else:
        # One full-HW slab is too big even at TN=8: split the spatial axis.
        tn = 8
        budget_thw = (per_buf_bytes // (tn * c * itemsize)) // 128 * 128
        thw = int(max(128, min(thw_full, budget_thw)))
    return int(tn), int(thw)


def _make_kernel(hw_total, thw, need_mask):
    groups = thw // 128

    def kernel(x_ref, w1_ref, b1_ref, w2_ref, b2_ref, o_ref, acc_ref):
        # x_ref:  (TN, C, thw)   input slab
        # w1_ref: (C, mid)       already scaled by 1/(H*W)
        # b1_ref: (1, mid)
        # w2_ref: (mid, D)       already scaled by 1/delta
        # b2_ref: (1, D)         already scaled by 1/delta
        # o_ref:  (TN, D)        output block (resident across the HW axis)
        # acc_ref:(TN, C, 128)   f32 lane-group pooled-sum accumulator
        hw_step = pl.program_id(1)

        x = x_ref[...].astype(jnp.float32)
        if need_mask:
            # Zero out the out-of-bounds spatial tail (ragged last HW block).
            lane = jax.lax.broadcasted_iota(jnp.int32, x.shape, 2)
            x = jnp.where(hw_step * thw + lane < hw_total, x, 0.0)

        # Lane-group VPU adds (128-wide, lane-tile aligned slices): keeps the
        # XLU out of the hot loop; hidden under the x DMA.
        partial = x[:, :, 0:128]
        for g in range(1, groups):
            partial = partial + x[:, :, g * 128:(g + 1) * 128]

        @pl.when(hw_step == 0)
        def _():
            acc_ref[...] = partial          # assign, no zero-init + add

        @pl.when(hw_step > 0)
        def _():
            acc_ref[...] += partial

        @pl.when(hw_step == pl.num_programs(1) - 1)
        def _():
            # Single cross-lane reduce + tiny MLP + exact softmax (off the
            # critical path; runs once per N tile).
            pooled = jnp.sum(acc_ref[...], axis=-1)                    # (TN, C)
            h = jnp.dot(pooled, w1_ref[...], preferred_element_type=jnp.float32)
            h = jnp.maximum(h + b1_ref[...], 0.0)                      # (TN, mid)
            y = jnp.dot(h, w2_ref[...], preferred_element_type=jnp.float32)
            y = y + b2_ref[...]                                        # (TN, D)
            m = jnp.max(y, axis=-1, keepdims=True)
            e = jnp.exp(y - m)
            o_ref[...] = (e / jnp.sum(e, axis=-1, keepdims=True)).astype(o_ref.dtype)

    return kernel


def dynamic_con2d_attention(x_nchw, w1, b1, w2, b2, delta, *, thw=None):
    """x_nchw: (N, C, H, W) (f32 or bf16). w1: (C, C//4), w2: (C//4, D),
    biases 1-D. Returns softmax logits of shape (N, D) in float32."""
    N, C, H, W = x_nchw.shape
    HW = H * W
    mid = w1.shape[1]
    D = w2.shape[1]
    itemsize = jnp.dtype(x_nchw.dtype).itemsize

    # ---- fold constant scales into the (tiny) weights at trace time ----
    inv_hw = 1.0 / float(HW)
    inv_delta = 1.0 / float(delta)
    w1f = w1.astype(jnp.float32) * inv_hw                 # absorbs avg-pool 1/(H*W)
    b1f = b1.reshape(1, mid).astype(jnp.float32)
    w2f = w2.astype(jnp.float32) * inv_delta              # absorbs 1/delta
    b2f = (b2.astype(jnp.float32) * inv_delta).reshape(1, D)

    # ---- per-generation VMEM budget ----
    vmem_cap = _vmem_capacity_bytes()
    vmem_budget = min(int(vmem_cap * 3 // 4), 96 << 20)   # ~48 MiB v7x, ~96 MiB v5e/v6e
    per_buf = max(2 << 20, (vmem_budget - (4 << 20)) // 3)  # 2x x double-buffer + scratch

    # ---- joint TN / thw selection (no input padding, no extra HBM pass) ----
    thw_full = _round_up(HW, 128)
    if thw is not None:
        thw = int(min(_round_up(int(thw), 128), thw_full))
        row_bytes = C * thw * itemsize
        TN = int(min(_round_up(N, 8), max(8, (per_buf // row_bytes) // 8 * 8)))
    else:
        TN, thw = _select_tiling(N, C, HW, itemsize, per_buf)

    grid = (pl.cdiv(N, TN), pl.cdiv(HW, thw))             # reduction axis last
    need_mask = (HW % thw) != 0

    x3 = x_nchw.reshape(N, C, HW)                         # no copies, no pads

    x_block_bytes = TN * C * thw * itemsize
    acc_bytes = TN * C * 128 * 4
    vmem_limit = int(max(16 << 20,
                         min(vmem_budget, 2 * x_block_bytes + acc_bytes + (8 << 20))))

    kernel = _make_kernel(HW, thw, need_mask)

    return pl.pallas_call(
        kernel,
        out_shape=jax.ShapeDtypeStruct((N, D), jnp.float32),
        grid_spec=pltpu.PrefetchScalarGridSpec(
            num_scalar_prefetch=0,
            grid=grid,
            in_specs=[
                # x: pipelined (TN, C, thw) slabs; ragged tails handled by
                # Pallas (N tail rows unused, HW tail masked in-kernel).
                pl.BlockSpec((TN, C, thw), lambda i, j: (i, 0, j)),
                # weights/biases: constant block index -> resident in VMEM.
                pl.BlockSpec((C, mid), lambda i, j: (0, 0)),
                pl.BlockSpec((1, mid), lambda i, j: (0, 0)),
                pl.BlockSpec((mid, D), lambda i, j: (0, 0)),
                pl.BlockSpec((1, D), lambda i, j: (0, 0)),
            ],
            # same output block for every HW step -> accumulator pattern.
            out_specs=pl.BlockSpec((TN, D), lambda i, j: (i, 0)),
            scratch_shapes=[pltpu.VMEM((TN, C, 128), jnp.float32)],
        ),
        compiler_params=pltpu.CompilerParams(
            dimension_semantics=("parallel", "arbitrary"),
            vmem_limit_bytes=vmem_limit,
        ),
    )(x3, w1f, b1f, w2f, b2f)


def _ref_forward(x_nchw, w1, b1, w2, b2, delta):
    pooled = jnp.mean(x_nchw.astype(jnp.float32), axis=(2, 3))
    h = jax.nn.relu(pooled @ w1 + b1)
    y = (h @ w2 + b2) * (1.0 / float(delta))
    return jax.nn.softmax(y, axis=1)


if __name__ == "__main__":
    # Shapes consistent with the module: channel_in=32 -> mid=8,
    # dynamic_number=4, delta=2.
    N, C, H, W = 2, 32, 16, 16
    mid = C // 4
    dynamic_number = 4
    delta = 2.0

    key = jax.random.PRNGKey(0)
    kx, k1, k2, k3, k4, kx2 = jax.random.split(key, 6)

    x = jax.random.normal(kx, (N, C, H, W), dtype=jnp.float32)
    # "Linear" params stored as (in, out) for the kernel.
    w1 = jax.random.normal(k1, (C, mid), dtype=jnp.float32) * 0.1
    b1 = jax.random.normal(k2, (mid,), dtype=jnp.float32) * 0.1
    w2 = jax.random.normal(k3, (mid, dynamic_number), dtype=jnp.float32) * 0.1
    b2 = jax.random.normal(k4, (dynamic_number,), dtype=jnp.float32) * 0.1

    # thw=128 forces a 2-step spatial reduction so the multi-step accumulation
    # path (assign / accumulate / epilogue under pl.when) is exercised.
    out = dynamic_con2d_attention(x, w1, b1, w2, b2, delta, thw=128)
    out = jax.block_until_ready(out)
    ref = _ref_forward(x, w1, b1, w2, b2, delta)
    assert out.shape == (N, dynamic_number)
    assert jnp.allclose(out, ref, atol=1e-5, rtol=1e-5)
    assert jnp.allclose(jnp.sum(out, axis=1), 1.0, atol=1e-5)

    # Ragged spatial size (HW=208, not a multiple of 128) -> single masked
    # step with default (auto) tiling; exercises the in-kernel tail mask.
    x2 = jax.random.normal(kx2, (N, C, 16, 13), dtype=jnp.float32)
    out2 = jax.block_until_ready(dynamic_con2d_attention(x2, w1, b1, w2, b2, delta))
    ref2 = _ref_forward(x2, w1, b1, w2, b2, delta)
    assert jnp.allclose(out2, ref2, atol=1e-5, rtol=1e-5)

    print("KERNEL_OK")
</pallas_src>

<mosaic_0001>
module attributes {stable_mosaic.version = 11 : i64} {
  func.func @kernel(%arg0: i32, %arg1: i32, %arg2: memref<8x32x128xf32, #tpu.memory_space<vmem>>, %arg3: memref<32x8xf32, #tpu.memory_space<vmem>>, %arg4: memref<1x8xf32, #tpu.memory_space<vmem>>, %arg5: memref<8x4xf32, #tpu.memory_space<vmem>>, %arg6: memref<1x4xf32, #tpu.memory_space<vmem>>, %arg7: memref<8x4xf32, #tpu.memory_space<vmem>>, %arg8: memref<8x32x128xf32, #tpu.memory_space<vmem>>) attributes {dimension_semantics = [#tpu.dimension_semantics<parallel>, #tpu.dimension_semantics<arbitrary>], iteration_bounds = array<i64: 1, 2>, scalar_prefetch = 0 : i64, scratch_operands = 1 : i64, tpu.core_type = #tpu.core_type<tc>, window_params = [{transform_indices = @transform_0, window_bounds = array<i64: 8, 32, 128>}, {pipeline_mode = #tpu.pipeline_mode<synchronous>, transform_indices = @transform_1, window_bounds = array<i64: 32, 8>}, {pipeline_mode = #tpu.pipeline_mode<synchronous>, transform_indices = @transform_2, window_bounds = array<i64: 1, 8>}, {pipeline_mode = #tpu.pipeline_mode<synchronous>, transform_indices = @transform_3, window_bounds = array<i64: 8, 4>}, {pipeline_mode = #tpu.pipeline_mode<synchronous>, transform_indices = @transform_4, window_bounds = array<i64: 1, 4>}, {transform_indices = @transform_5, window_bounds = array<i64: 8, 4>}]} {
    %c0 = arith.constant 0 : index
    %c0_0 = arith.constant 0 : index
    %c0_1 = arith.constant 0 : index
    %0 = vector.load %arg2[%c0, %c0_0, %c0_1] : memref<8x32x128xf32, #tpu.memory_space<vmem>>, vector<8x32x128xf32>
    %c0_i32 = arith.constant 0 : i32
    %1 = arith.cmpi eq, %arg1, %c0_i32 : i32
    %2 = arith.extui %1 : i1 to i32
    %c0_i32_2 = arith.constant 0 : i32
    %3 = arith.cmpi ne, %2, %c0_i32_2 : i32
    scf.if %3 {
      %c0_6 = arith.constant 0 : index
      %c0_7 = arith.constant 0 : index
      %c0_8 = arith.constant 0 : index
      %10 = vector.load %arg8[%c0_6, %c0_7, %c0_8] : memref<8x32x128xf32, #tpu.memory_space<vmem>>, vector<8x32x128xf32>
      tpu.vector_store %arg8[%c0_6, %c0_7, %c0_8], %0 {strides = array<i32>} : memref<8x32x128xf32, #tpu.memory_space<vmem>>, vector<8x32x128xf32>,
    } else {
    }
    %c0_i32_3 = arith.constant 0 : i32
    %4 = arith.cmpi sgt, %arg1, %c0_i32_3 : i32
    %5 = arith.extui %4 : i1 to i32
    %c0_i32_4 = arith.constant 0 : i32
    %6 = arith.cmpi ne, %5, %c0_i32_4 : i32
    scf.if %6 {
      %c0_6 = arith.constant 0 : index
      %c0_7 = arith.constant 0 : index
      %c0_8 = arith.constant 0 : index
      %10 = vector.load %arg8[%c0_6, %c0_7, %c0_8] : memref<8x32x128xf32, #tpu.memory_space<vmem>>, vector<8x32x128xf32>
      %11 = arith.addf %10, %0 : vector<8x32x128xf32>
      %c0_9 = arith.constant 0 : index
      %c0_10 = arith.constant 0 : index
      %c0_11 = arith.constant 0 : index
      %12 = vector.load %arg8[%c0_9, %c0_10, %c0_11] : memref<8x32x128xf32, #tpu.memory_space<vmem>>, vector<8x32x128xf32>
      tpu.vector_store %arg8[%c0_9, %c0_10, %c0_11], %11 {strides = array<i32>} : memref<8x32x128xf32, #tpu.memory_space<vmem>>, vector<8x32x128xf32>,
    } else {
    }
    %c1_i32 = arith.constant 1 : i32
    %7 = arith.cmpi eq, %arg1, %c1_i32 : i32
    %8 = arith.extui %7 : i1 to i32
    %c0_i32_5 = arith.constant 0 : i32
    %9 = arith.cmpi ne, %8, %c0_i32_5 : i32
    scf.if %9 {
      %c0_6 = arith.constant 0 : index
      %c0_7 = arith.constant 0 : index
      %c0_8 = arith.constant 0 : index
      %10 = vector.load %arg8[%c0_6, %c0_7, %c0_8] : memref<8x32x128xf32, #tpu.memory_space<vmem>>, vector<8x32x128xf32>
      %cst = arith.constant dense<0.000000e+00> : vector<8x32xf32>
      %11 = vector.multi_reduction <add>, %10, %cst [2] : vector<8x32x128xf32> to vector<8x32xf32>
      %c0_9 = arith.constant 0 : index
      %c0_10 = arith.constant 0 : index
      %12 = vector.load %arg3[%c0_9, %c0_10] : memref<32x8xf32, #tpu.memory_space<vmem>>, vector<32x8xf32>
      %cst_11 = arith.constant dense<0.000000e+00> : vector<8x8xf32>
      %13 = tpu.matmul %11, %12, %cst_11 {dimension_numbers = #tpu.dot_dimension_numbers<[1], [0], [0], [1], [0, 0, 1, 1], [], []>} : vector<8x32xf32>, vector<32x8xf32>, vector<8x8xf32> -> vector<8x8xf32>
      %c0_12 = arith.constant 0 : index
      %c0_13 = arith.constant 0 : index
      %14 = vector.load %arg4[%c0_12, %c0_13] : memref<1x8xf32, #tpu.memory_space<vmem>>, vector<1x8xf32>
      %15 = vector.broadcast %14 : vector<1x8xf32> to vector<8x8xf32>
      %16 = arith.addf %13, %15 : vector<8x8xf32>
      %cst_14 = arith.constant 0.000000e+00 : f32
      %17 = vector.broadcast %cst_14 : f32 to vector<8x8xf32>
      %18 = arith.maximumf %16, %17 : vector<8x8xf32>
      %c0_15 = arith.constant 0 : index
      %c0_16 = arith.constant 0 : index
      %19 = vector.load %arg5[%c0_15, %c0_16] : memref<8x4xf32, #tpu.memory_space<vmem>>, vector<8x4xf32>
      %cst_17 = arith.constant dense<0.000000e+00> : vector<8x4xf32>
      %20 = tpu.matmul %18, %19, %cst_17 {dimension_numbers = #tpu.dot_dimension_numbers<[1], [0], [0], [1], [0, 0, 1, 1], [], []>} : vector<8x8xf32>, vector<8x4xf32>, vector<8x4xf32> -> vector<8x4xf32>
      %c0_18 = arith.constant 0 : index
      %c0_19 = arith.constant 0 : index
      %21 = vector.load %arg6[%c0_18, %c0_19] : memref<1x4xf32, #tpu.memory_space<vmem>>, vector<1x4xf32>
      %22 = vector.broadcast %21 : vector<1x4xf32> to vector<8x4xf32>
      %23 = arith.addf %20, %22 : vector<8x4xf32>
      %cst_20 = arith.constant dense<0xFF800000> : vector<8xf32>
      %24 = vector.multi_reduction <maximumf>, %23, %cst_20 [1] : vector<8x4xf32> to vector<8xf32>
      %25 = vector.shape_cast %24 : vector<8xf32> to vector<8x1xf32>
      %26 = vector.broadcast %25 : vector<8x1xf32> to vector<8x4xf32>
      %27 = arith.subf %23, %26 : vector<8x4xf32>
      %28 = math.exp %27 : vector<8x4xf32>
      %cst_21 = arith.constant dense<0.000000e+00> : vector<8xf32>
      %29 = vector.multi_reduction <add>, %28, %cst_21 [1] : vector<8x4xf32> to vector<8xf32>
      %30 = vector.shape_cast %29 : vector<8xf32> to vector<8x1xf32>
      %31 = vector.broadcast %30 : vector<8x1xf32> to vector<8x4xf32>
      %32 = arith.divf %28, %31 : vector<8x4xf32>
      %c0_22 = arith.constant 0 : index
      %c0_23 = arith.constant 0 : index
      %33 = vector.load %arg7[%c0_22, %c0_23] : memref<8x4xf32, #tpu.memory_space<vmem>>, vector<8x4xf32>
      tpu.vector_store %arg7[%c0_22, %c0_23], %32 {strides = array<i32>} : memref<8x4xf32, #tpu.memory_space<vmem>>, vector<8x4xf32>,
    } else {
    }
    return
  }
  func.func @transform_0(%arg0: i32, %arg1: i32) -> (i32, i32, i32) {
    %c0_i32 = arith.constant 0 : i32
    %c0_i32_0 = arith.constant 0 : i32
    return %arg0, %c0_i32, %arg1 : i32, i32, i32
  }
  func.func @transform_1(%arg0: i32, %arg1: i32) -> (i32, i32) {
    %c0_i32 = arith.constant 0 : i32
    %c0_i32_0 = arith.constant 0 : i32
    %c0_i32_1 = arith.constant 0 : i32
    return %c0_i32, %c0_i32_0 : i32, i32
  }
  func.func @transform_2(%arg0: i32, %arg1: i32) -> (i32, i32) {
    %c0_i32 = arith.constant 0 : i32
    %c0_i32_0 = arith.constant 0 : i32
    %c0_i32_1 = arith.constant 0 : i32
    return %c0_i32, %c0_i32_0 : i32, i32
  }
  func.func @transform_3(%arg0: i32, %arg1: i32) -> (i32, i32) {
    %c0_i32 = arith.constant 0 : i32
    %c0_i32_0 = arith.constant 0 : i32
    %c0_i32_1 = arith.constant 0 : i32
    return %c0_i32, %c0_i32_0 : i32, i32
  }
  func.func @transform_4(%arg0: i32, %arg1: i32) -> (i32, i32) {
    %c0_i32 = arith.constant 0 : i32
    %c0_i32_0 = arith.constant 0 : i32
    %c0_i32_1 = arith.constant 0 : i32
    return %c0_i32, %c0_i32_0 : i32, i32
  }
  func.func @transform_5(%arg0: i32, %arg1: i32) -> (i32, i32) {
    %c0_i32 = arith.constant 0 : i32
    %c0_i32_0 = arith.constant 0 : i32
    return %arg0, %c0_i32 : i32, i32
  }
}

</mosaic_0001>

<llo_original>
// kernel: tpu_custom_call.1
$region0: #{tpu_custom_call.1}
  #allocation0 [shape = 'u32[]', space=smem, size = 0x4, offset = 0x4, fixed_abs, tag = 'smem constant byte address 0x4 - core index']
  #allocation1 [shape = 'u32[144,128]{1,0:T(1,128)}', space=vmem, size = 0x12000, scoped, tag = 'internal scratch']
  #allocation2 [shape = 'f32[8,32,128]{2,1,0:T(8,128)}', space=vmem, size = 0x20000, scoped, tag = 'scratch operand']
  %s0 = inlined_call_operand.hbm [shape: f32[2,32,256], index: 0, kind: input, shape index: {}]
  %s1 = inlined_call_operand.vmem [shape: f32[32,8], index: 1, kind: input, shape index: {}]
  %s2 = inlined_call_operand.vmem [shape: f32[1,8], index: 2, kind: input, shape index: {}]
  %s3 = inlined_call_operand.vmem [shape: f32[8,4], index: 3, kind: input, shape index: {}]
  %s4 = inlined_call_operand.vmem [shape: f32[1,4], index: 4, kind: input, shape index: {}]
  %s5 = inlined_call_operand.hbm [shape: f32[2,4], index: 5, kind: output, shape index: {}]
  %s6 = sld [smem:[#allocation0]]
  $region69: #{tpu_custom_call.1} parent=0
    _
  %s8 = ssub.s32 1, %s6
  %s9 = scalar_select 0, %s8, %s6
  $region1: #{tpu_custom_call.1} parent=0
    #allocation3 [shape = 'u8[262144]{0}', space=vmem, size = 0x40000, scoped, tag = 'input window, operand 0']
    #allocation4 [shape = 's32[2]{0}', space=sflag, size = 0x8, scoped, tag = 'scoped memory for tpu_custom_call.1']
    #allocation5 [shape = 's32[2]{0}', space=sflag, size = 0x8, scoped, tag = 'scoped memory for tpu_custom_call.1']
    #allocation6 [shape = 'u8[4096]{0}', space=vmem, size = 0x1000, scoped, tag = 'output window, operand 0, single buffered']
    %10 = vsyncpa [#allocation4], 0
    %s11 = scalar_lea.sflag [#allocation4], 1
    %12 = vsyncpa %s11, 0
    %13 = vsyncpa [#allocation5], 0
    loop: start=0, step=1, limit=4
    $region2: #{tpu_custom_call.1} parent=1 // loop_pre_header
      _
    $region3: #{tpu_custom_call.1} parent=1 // loop_header
      %s15 = sphi 0, %s19
      %p16 = scmp.ge.s32.totalorder %s15, 4
      %s22 = sphi 0, %s34
      %s23 = sphi 0, %s30
      %s24 = sphi 0, %s22
      %s25 = sphi 0, %s23
      %s26 = sphi 0, %s24
      %s27 = sphi 0, %s25
      %s39 = sphi 0, %s41
      %s42 = sphi 0, %s39
      %s43 = sphi 0, %s42
      %s59 = sphi 0, %s43
      %s63 = sphi 0, %s63
      %s65 = sphi 0, %s63
      %s66 = sphi 0, %s65
      %s80 = sphi 0, %s66
      %s84 = sphi 0, %s84
      %s86 = sphi 0, %s84
      %s87 = sphi 0, %s86
      %s101 = sphi 0, %s87
      %s105 = sphi 0, %s105
      %s107 = sphi 0, %s105
      %s108 = sphi 0, %s107
      %s122 = sphi 0, %s108
      %s126 = sphi 0, %s126
      %s128 = sphi 0, %s126
      %s129 = sphi 0, %s128
      %s143 = sphi 0, %s129
      %s149 = sphi 0, %s151
      %s152 = sphi 0, %s149
      %s153 = sphi 0, %s152
      %s169 = sphi 0, %s153
    $region4: #{tpu_custom_call.1} parent=1 // loop_header_branch
      %18 = sbr.rel (%p16) target = $region8
    $region5: #{tpu_custom_call.1} parent=1 // loop_body
      %s20 = ssub.s32 %s15, 1
      %s21 = ssub.s32 %s15, 2
      %s28 = sadd.s32 1, %s23
      %p29 = scmp.ge.s32.totalorder %s28, 2
      %s30 = scalar_select %p29, 0, %s28
      %s31 = sadd.s32 1, %s22
      %s32 = scalar_select %p29, %s31, %s22
      %p33 = scmp.ge.s32.totalorder %s32, 1
      %s34 = scalar_select %p33, 0, %s32
      %s35 = ssub.s32 %s22, %s34
      %s36 = ssub.s32 %s23, %s30
      %s37 = sor.u32 %s35, %s36
      %p38 = scmp.eq.s32.totalorder %s37, 0
      %s40 = sadd.s32 %s39, 1
      %s41 = scalar_select %p38, %s39, %s40
      %p44 = pneg %p38
      %p45 = scmp.eq.s32.totalorder %s15, 1
      %p46 = por %p44, %p45
      %p47 = scmp.ne.s32.totalorder %s39, %s42
      %p48 = scmp.eq.s32.totalorder %s15, 0
      %p49 = por %p47, %p48
      %p50 = scmp.ne.s32.totalorder %s39, %s42
      %p51 = scmp.eq.s32.totalorder %s20, 1
      %p52 = por %p50, %p51
      %p53 = scmp.ne.s32.totalorder %s42, %s43
      %p54 = scmp.eq.s32.totalorder %s20, 0
      %p55 = por %p53, %p54
      %p56 = scmp.ne.s32.totalorder %s42, %s43
      %p57 = scmp.eq.s32.totalorder %s21, 1
      %p58 = por %p56, %p57
      %p60 = scmp.ne.s32.totalorder %s43, %s59
      %p61 = scmp.eq.s32.totalorder %s21, 0
      %p62 = por %p60, %p61
      %s64 = sadd.s32 %s63, 1
      %p67 = scmp.eq.s32.totalorder %s15, 1
      %p68 = scmp.ne.s32.totalorder %s63, %s65
      %p69 = scmp.eq.s32.totalorder %s15, 0
      %p70 = por %p68, %p69
      %p71 = scmp.ne.s32.totalorder %s63, %s65
      %p72 = scmp.eq.s32.totalorder %s20, 1
      %p73 = por %p71, %p72
      %p74 = scmp.ne.s32.totalorder %s65, %s66
      %p75 = scmp.eq.s32.totalorder %s20, 0
      %p76 = por %p74, %p75
      %p77 = scmp.ne.s32.totalorder %s65, %s66
      %p78 = scmp.eq.s32.totalorder %s21, 1
      %p79 = por %p77, %p78
      %p81 = scmp.ne.s32.totalorder %s66, %s80
      %p82 = scmp.eq.s32.totalorder %s21, 0
      %p83 = por %p81, %p82
      %s85 = sadd.s32 %s84, 1
      %p88 = scmp.eq.s32.totalorder %s15, 1
      %p89 = scmp.ne.s32.totalorder %s84, %s86
      %p90 = scmp.eq.s32.totalorder %s15, 0
      %p91 = por %p89, %p90
      %p92 = scmp.ne.s32.totalorder %s84, %s86
      %p93 = scmp.eq.s32.totalorder %s20, 1
      %p94 = por %p92, %p93
      %p95 = scmp.ne.s32.totalorder %s86, %s87
      %p96 = scmp.eq.s32.totalorder %s20, 0
      %p97 = por %p95, %p96
      %p98 = scmp.ne.s32.totalorder %s86, %s87
      %p99 = scmp.eq.s32.totalorder %s21, 1
      %p100 = por %p98, %p99
      %p102 = scmp.ne.s32.totalorder %s87, %s101
      %p103 = scmp.eq.s32.totalorder %s21, 0
      %p104 = por %p102, %p103
      %s106 = sadd.s32 %s105, 1
      %p109 = scmp.eq.s32.totalorder %s15, 1
      %p110 = scmp.ne.s32.totalorder %s105, %s107
      %p111 = scmp.eq.s32.totalorder %s15, 0
      %p112 = por %p110, %p111
      %p113 = scmp.ne.s32.totalorder %s105, %s107
      %p114 = scmp.eq.s32.totalorder %s20, 1
      %p115 = por %p113, %p114
      %p116 = scmp.ne.s32.totalorder %s107, %s108
      %p117 = scmp.eq.s32.totalorder %s20, 0
      %p118 = por %p116, %p117
      %p119 = scmp.ne.s32.totalorder %s107, %s108
      %p120 = scmp.eq.s32.totalorder %s21, 1
      %p121 = por %p119, %p120
      %p123 = scmp.ne.s32.totalorder %s108, %s122
      %p124 = scmp.eq.s32.totalorder %s21, 0
      %p125 = por %p123, %p124
      %s127 = sadd.s32 %s126, 1
      %p130 = scmp.eq.s32.totalorder %s15, 1
      %p131 = scmp.ne.s32.totalorder %s126, %s128
      %p132 = scmp.eq.s32.totalorder %s15, 0
      %p133 = por %p131, %p132
      %p134 = scmp.ne.s32.totalorder %s126, %s128
      %p135 = scmp.eq.s32.totalorder %s20, 1
      %p136 = por %p134, %p135
      %p137 = scmp.ne.s32.totalorder %s128, %s129
      %p138 = scmp.eq.s32.totalorder %s20, 0
      %p139 = por %p137, %p138
      %p140 = scmp.ne.s32.totalorder %s128, %s129
      %p141 = scmp.eq.s32.totalorder %s21, 1
      %p142 = por %p140, %p141
      %p144 = scmp.ne.s32.totalorder %s129, %s143
      %p145 = scmp.eq.s32.totalorder %s21, 0
      %p146 = por %p144, %p145
      %s147 = ssub.s32 %s22, %s34
      %p148 = scmp.eq.s32.totalorder %s147, 0
      %s150 = sadd.s32 %s149, 1
      %s151 = scalar_select %p148, %s149, %s150
      %p154 = pneg %p148
      %p155 = scmp.eq.s32.totalorder %s15, 1
      %p156 = por %p154, %p155
      %p157 = scmp.ne.s32.totalorder %s149, %s152
      %p158 = scmp.eq.s32.totalorder %s15, 0
      %p159 = por %p157, %p158
      %p160 = scmp.ne.s32.totalorder %s149, %s152
      %p161 = scmp.eq.s32.totalorder %s20, 1
      %p162 = por %p160, %p161
      %p163 = scmp.ne.s32.totalorder %s152, %s153
      %p164 = scmp.eq.s32.totalorder %s20, 0
      %p165 = por %p163, %p164
      %p166 = scmp.ne.s32.totalorder %s152, %s153
      %p167 = scmp.eq.s32.totalorder %s21, 1
      %p168 = por %p166, %p167
      %p170 = scmp.ne.s32.totalorder %s153, %s169
      %p171 = scmp.eq.s32.totalorder %s21, 0
      %p172 = por %p170, %p171
      %p173 = scmp.le.s32.totalorder 1, %s15
      %p174 = scmp.lt.s32.totalorder %s15, 3
      %p175 = pnand %p173, %p174
      %p176 = pneg %p175
      // Predicated region
      $region9: #{tpu_custom_call.1} parent=5 // pred_check
        _
      $region10: #{tpu_custom_call.1} parent=5 // pred_check_branch
        %178 = sbr.rel (%p175) target = $region12
      $region11: #{tpu_custom_call.1} parent=5 // pred_region
        %s179 = ssub.s32 %s15, 1
        // Predicated region
        $region13: #{tpu_custom_call.1} parent=11 // pred_check
          %p180 = pneg %p76
        $region14: #{tpu_custom_call.1} parent=11 // pred_check_branch
          %182 = sbr.rel (%p180) target = $region16
        $region15: #{tpu_custom_call.1} parent=11 // pred_region
          _
        $region16: #{tpu_custom_call.1} parent=11 // pred_fallthru
          _
        // Predicated region
        $region17: #{tpu_custom_call.1} parent=11 // pred_check
          %p183 = pneg %p97
        $region18: #{tpu_custom_call.1} parent=11 // pred_check_branch
          %185 = sbr.rel (%p183) target = $region20
        $region19: #{tpu_custom_call.1} parent=11 // pred_region
          _
        $region20: #{tpu_custom_call.1} parent=11 // pred_fallthru
          _
        // Predicated region
        $region21: #{tpu_custom_call.1} parent=11 // pred_check
          %p186 = pneg %p118
        $region22: #{tpu_custom_call.1} parent=11 // pred_check_branch
          %188 = sbr.rel (%p186) target = $region24
        $region23: #{tpu_custom_call.1} parent=11 // pred_region
          _
        $region24: #{tpu_custom_call.1} parent=11 // pred_fallthru
          _
        // Predicated region
        $region25: #{tpu_custom_call.1} parent=11 // pred_check
          %p189 = pneg %p139
        $region26: #{tpu_custom_call.1} parent=11 // pred_check_branch
          %191 = sbr.rel (%p189) target = $region28
        $region27: #{tpu_custom_call.1} parent=11 // pred_region
          _
        $region28: #{tpu_custom_call.1} parent=11 // pred_fallthru
          _
      $region12: #{tpu_custom_call.1} parent=5 // pred_fallthru
        _
      %p192 = scmp.lt.s32.totalorder %s15, 2
      // Predicated region
      $region29: #{tpu_custom_call.1} parent=5 // pred_check
        %p193 = pneg %p192
      $region30: #{tpu_custom_call.1} parent=5 // pred_check_branch
        %195 = sbr.rel (%p193) target = $region32
      $region31: #{tpu_custom_call.1} parent=5 // pred_region
        // Predicated region
        $region33: #{tpu_custom_call.1} parent=31 // pred_check
          %p196 = pneg %p49
        $region34: #{tpu_custom_call.1} parent=31 // pred_check_branch
          %198 = sbr.rel (%p196) target = $region36
        $region35: #{tpu_custom_call.1} parent=31 // pred_region
          %s199 = sand.u32 %s39, 1
          %s200 = scalar_lea.sflag [#allocation4], %s199
          %s201 = sand.u32 %s39, 1
          %s202 = smul.addr %s201, 256
          %s203 = scalar_lea.vmem [#allocation3], %s202
          %s204 = smul.u32 8, %s22
          %s205 = ssub.s32 2, %s204
          %s206 = smul.u32 128, %s205
          %s207 = smul.u32 %s206, 4
          %s209 = ssub.s32 4096, %s207
          %210 = vsyncadd %s200, %s209
          %p211 = scmp.ne.s32.totalorder 0, %s207
          %s212 = smul.addr %s204, 8
          %s213 = sadd.s32 %s23, %s212
          %s214 = smul.addr %s213, 128
          %s215 = scalar_lea.hbm %s0, %s214
          %s216 = smul.u32 %s205, 4
          %s217 = smul.u32 8, %s216
          %s218 = sshll.u32 %s203, 4
          %s219 = int_to_ptr.vmem [resolvable:$true] %s218
          %s220 = sshll.u32 %s217, 4
          %224 = dma.hbm_to_vmem [thread:$0]  (%p211), %s215, %s220, %s219, %s200, 256, 128, 8
        $region36: #{tpu_custom_call.1} parent=31 // pred_fallthru
          _
      $region32: #{tpu_custom_call.1} parent=5 // pred_fallthru
        _
      %p225 = scmp.le.s32.totalorder 1, %s15
      %p226 = scmp.lt.s32.totalorder %s15, 3
      %p227 = pnand %p225, %p226
      %p228 = pneg %p227
      // Predicated region
      $region37: #{tpu_custom_call.1} parent=5 // pred_check
        _
      $region38: #{tpu_custom_call.1} parent=5 // pred_check_branch
        %230 = sbr.rel (%p227) target = $region40
      $region39: #{tpu_custom_call.1} parent=5 // pred_region
        %s231 = ssub.s32 %s15, 1
        %s232 = sand.u32 %s42, 1
        %s233 = scalar_lea.sflag [#allocation4], %s232
        %s234 = sand.u32 %s42, 1
        %s235 = smul.addr %s234, 256
        %s236 = scalar_lea.vmem [#allocation3], %s235
        // Predicated region
        $region41: #{tpu_custom_call.1} parent=39 // pred_check
          %p237 = pneg %p55
        $region42: #{tpu_custom_call.1} parent=39 // pred_check_branch
          %239 = sbr.rel (%p237) target = $region44
        $region43: #{tpu_custom_call.1} parent=39 // pred_region
          %240 = dma.done %s233, 4096
        $region44: #{tpu_custom_call.1} parent=39 // pred_fallthru
          _
        %s241 = sand.u32 %s42, 1
        %s242 = scalar_lea.sflag [#allocation4], %s241
        %s243 = sand.u32 %s42, 1
        %s244 = smul.addr %s243, 256
        %s245 = scalar_lea.vmem [#allocation3], %s244
        %p246 = pneg %p55
        %p247 = pneg %p52
        %p248 = pneg %p76
        %p249 = pneg %p73
        %p250 = pneg %p97
        %p251 = pneg %p94
        %p252 = pneg %p118
        %p253 = pneg %p115
        %p254 = pneg %p139
        %p255 = pneg %p136
        %p256 = pneg %p165
        %p257 = pneg %p162
        %s258 = smul.u32 8, %s24
        %s259 = ssub.s32 2, %s258
        %s260 = smul.u32 128, %s259
        %s261 = smul.u32 %s260, 4
        %s262 = smul.u32 4, %s24
        %s263 = ssub.s32 1, %s262
        %s264 = smul.u32 32, %s263
        %v265 = vld [vmem:[%s236] sm:$0xff]
        %v266 = vld [vmem:[%s236 + $0x8] sm:$0xff]
        %v267 = vld [vmem:[%s236 + $0x10] sm:$0xff]
        %v268 = vld [vmem:[%s236 + $0x18] sm:$0xff]
        %v269 = vld [vmem:[%s236 + $0x20] sm:$0xff]
        %v270 = vld [vmem:[%s236 + $0x28] sm:$0xff]
        %v271 = vld [vmem:[%s236 + $0x30] sm:$0xff]
        %v272 = vld [vmem:[%s236 + $0x38] sm:$0xff]
        %v273 = vld [vmem:[%s236 + $0x40] sm:$0xff]
        %v274 = vld [vmem:[%s236 + $0x48] sm:$0xff]
        %v275 = vld [vmem:[%s236 + $0x50] sm:$0xff]
        %v276 = vld [vmem:[%s236 + $0x58] sm:$0xff]
        %v277 = vld [vmem:[%s236 + $0x60] sm:$0xff]
        %v278 = vld [vmem:[%s236 + $0x68] sm:$0xff]
        %v279 = vld [vmem:[%s236 + $0x70] sm:$0xff]
        %v280 = vld [vmem:[%s236 + $0x78] sm:$0xff]
        %v281 = vld [vmem:[%s236 + $0x80] sm:$0xff]
        %v282 = vld [vmem:[%s236 + $0x88] sm:$0xff]
        %v283 = vld [vmem:[%s236 + $0x90] sm:$0xff]
        %v284 = vld [vmem:[%s236 + $0x98] sm:$0xff]
        %v285 = vld [vmem:[%s236 + $0xa0] sm:$0xff]
        %v286 = vld [vmem:[%s236 + $0xa8] sm:$0xff]
        %v287 = vld [vmem:[%s236 + $0xb0] sm:$0xff]
        %v288 = vld [vmem:[%s236 + $0xb8] sm:$0xff]
        %v289 = vld [vmem:[%s236 + $0xc0] sm:$0xff]
        %v290 = vld [vmem:[%s236 + $0xc8] sm:$0xff]
        %v291 = vld [vmem:[%s236 + $0xd0] sm:$0xff]
        %v292 = vld [vmem:[%s236 + $0xd8] sm:$0xff]
        %v293 = vld [vmem:[%s236 + $0xe0] sm:$0xff]
        %v294 = vld [vmem:[%s236 + $0xe8] sm:$0xff]
        %v295 = vld [vmem:[%s236 + $0xf0] sm:$0xff]
        %v296 = vld [vmem:[%s236 + $0xf8] sm:$0xff]
        %p297 = scmp.eq.s32.totalorder %s25, 0
        // Predicated region
        $region45: #{tpu_custom_call.1} parent=39 // pred_check
          %p298 = pneg %p297
        $region46: #{tpu_custom_call.1} parent=39 // pred_check_branch
          %300 = sbr.rel (%p298) target = $region48
        $region47: #{tpu_custom_call.1} parent=39 // pred_region
          %301 = vst [vmem:[#allocation2] sm:$0xff] %v265
          %302 = vst [vmem:[#allocation2 + $0x8] sm:$0xff] %v266
          %303 = vst [vmem:[#allocation2 + $0x10] sm:$0xff] %v267
          %304 = vst [vmem:[#allocation2 + $0x18] sm:$0xff] %v268
          %305 = vst [vmem:[#allocation2 + $0x20] sm:$0xff] %v269
          %306 = vst [vmem:[#allocation2 + $0x28] sm:$0xff] %v270
          %307 = vst [vmem:[#allocation2 + $0x30] sm:$0xff] %v271
          %308 = vst [vmem:[#allocation2 + $0x38] sm:$0xff] %v272
          %309 = vst [vmem:[#allocation2 + $0x40] sm:$0xff] %v273
          %310 = vst [vmem:[#allocation2 + $0x48] sm:$0xff] %v274
          %311 = vst [vmem:[#allocation2 + $0x50] sm:$0xff] %v275
          %312 = vst [vmem:[#allocation2 + $0x58] sm:$0xff] %v276
          %313 = vst [vmem:[#allocation2 + $0x60] sm:$0xff] %v277
          %314 = vst [vmem:[#allocation2 + $0x68] sm:$0xff] %v278
          %315 = vst [vmem:[#allocation2 + $0x70] sm:$0xff] %v279
          %316 = vst [vmem:[#allocation2 + $0x78] sm:$0xff] %v280
          %317 = vst [vmem:[#allocation2 + $0x80] sm:$0xff] %v281
          %318 = vst [vmem:[#allocation2 + $0x88] sm:$0xff] %v282
          %319 = vst [vmem:[#allocation2 + $0x90] sm:$0xff] %v283
          %320 = vst [vmem:[#allocation2 + $0x98] sm:$0xff] %v284
          %321 = vst [vmem:[#allocation2 + $0xa0] sm:$0xff] %v285
          %322 = vst [vmem:[#allocation2 + $0xa8] sm:$0xff] %v286
          %323 = vst [vmem:[#allocation2 + $0xb0] sm:$0xff] %v287
          %324 = vst [vmem:[#allocation2 + $0xb8] sm:$0xff] %v288
          %325 = vst [vmem:[#allocation2 + $0xc0] sm:$0xff] %v289
          %326 = vst [vmem:[#allocation2 + $0xc8] sm:$0xff] %v290
          %327 = vst [vmem:[#allocation2 + $0xd0] sm:$0xff] %v291
          %328 = vst [vmem:[#allocation2 + $0xd8] sm:$0xff] %v292
          %329 = vst [vmem:[#allocation2 + $0xe0] sm:$0xff] %v293
          %330 = vst [vmem:[#allocation2 + $0xe8] sm:$0xff] %v294
          %331 = vst [vmem:[#allocation2 + $0xf0] sm:$0xff] %v295
          %332 = vst [vmem:[#allocation2 + $0xf8] sm:$0xff] %v296
        $region48: #{tpu_custom_call.1} parent=39 // pred_fallthru
          _
        %p333 = scmp.gt.s32.totalorder %s25, 0
        // Predicated region
        $region49: #{tpu_custom_call.1} parent=39 // pred_check
          %p334 = pneg %p333
        $region50: #{tpu_custom_call.1} parent=39 // pred_check_branch
          %336 = sbr.rel (%p334) target = $region52
        $region51: #{tpu_custom_call.1} parent=39 // pred_region
          %v337 = vld [vmem:[#allocation2] sm:$0xff]
          %v338 = vld [vmem:[#allocation2 + $0x8] sm:$0xff]
          %v339 = vld [vmem:[#allocation2 + $0x10] sm:$0xff]
          %v340 = vld [vmem:[#allocation2 + $0x18] sm:$0xff]
          %v341 = vld [vmem:[#allocation2 + $0x20] sm:$0xff]
          %v342 = vld [vmem:[#allocation2 + $0x28] sm:$0xff]
          %v343 = vld [vmem:[#allocation2 + $0x30] sm:$0xff]
          %v344 = vld [vmem:[#allocation2 + $0x38] sm:$0xff]
          %v345 = vld [vmem:[#allocation2 + $0x40] sm:$0xff]
          %v346 = vld [vmem:[#allocation2 + $0x48] sm:$0xff]
          %v347 = vld [vmem:[#allocation2 + $0x50] sm:$0xff]
          %v348 = vld [vmem:[#allocation2 + $0x58] sm:$0xff]
          %v349 = vld [vmem:[#allocation2 + $0x60] sm:$0xff]
          %v350 = vld [vmem:[#allocation2 + $0x68] sm:$0xff]
          %v351 = vld [vmem:[#allocation2 + $0x70] sm:$0xff]
          %v352 = vld [vmem:[#allocation2 + $0x78] sm:$0xff]
          %v353 = vld [vmem:[#allocation2 + $0x80] sm:$0xff]
          %v354 = vld [vmem:[#allocation2 + $0x88] sm:$0xff]
          %v355 = vld [vmem:[#allocation2 + $0x90] sm:$0xff]
          %v356 = vld [vmem:[#allocation2 + $0x98] sm:$0xff]
          %v357 = vld [vmem:[#allocation2 + $0xa0] sm:$0xff]
          %v358 = vld [vmem:[#allocation2 + $0xa8] sm:$0xff]
          %v359 = vld [vmem:[#allocation2 + $0xb0] sm:$0xff]
          %v360 = vld [vmem:[#allocation2 + $0xb8] sm:$0xff]
          %v361 = vld [vmem:[#allocation2 + $0xc0] sm:$0xff]
          %v362 = vld [vmem:[#allocation2 + $0xc8] sm:$0xff]
          %v363 = vld [vmem:[#allocation2 + $0xd0] sm:$0xff]
          %v364 = vld [vmem:[#allocation2 + $0xd8] sm:$0xff]
          %v365 = vld [vmem:[#allocation2 + $0xe0] sm:$0xff]
          %v366 = vld [vmem:[#allocation2 + $0xe8] sm:$0xff]
          %v367 = vld [vmem:[#allocation2 + $0xf0] sm:$0xff]
          %v368 = vld [vmem:[#allocation2 + $0xf8] sm:$0xff]
          %v369 = vadd.f32 %v337, %v265
          %v370 = vadd.f32 %v338, %v266
          %v371 = vadd.f32 %v339, %v267
          %v372 = vadd.f32 %v340, %v268
          %v373 = vadd.f32 %v341, %v269
          %v374 = vadd.f32 %v342, %v270
          %v375 = vadd.f32 %v343, %v271
          %v376 = vadd.f32 %v344, %v272
          %v377 = vadd.f32 %v345, %v273
          %v378 = vadd.f32 %v346, %v274
          %v379 = vadd.f32 %v347, %v275
          %v380 = vadd.f32 %v348, %v276
          %v381 = vadd.f32 %v349, %v277
          %v382 = vadd.f32 %v350, %v278
          %v383 = vadd.f32 %v351, %v279
          %v384 = vadd.f32 %v352, %v280
          %v385 = vadd.f32 %v353, %v281
          %v386 = vadd.f32 %v354, %v282
          %v387 = vadd.f32 %v355, %v283
          %v388 = vadd.f32 %v356, %v284
          %v389 = vadd.f32 %v357, %v285
          %v390 = vadd.f32 %v358, %v286
          %v391 = vadd.f32 %v359, %v287
          %v392 = vadd.f32 %v360, %v288
          %v393 = vadd.f32 %v361, %v289
          %v394 = vadd.f32 %v362, %v290
          %v395 = vadd.f32 %v363, %v291
          %v396 = vadd.f32 %v364, %v292
          %v397 = vadd.f32 %v365, %v293
          %v398 = vadd.f32 %v366, %v294
          %v399 = vadd.f32 %v367, %v295
          %v400 = vadd.f32 %v368, %v296
          %401 = vst [vmem:[#allocation2] sm:$0xff] %v369
          %402 = vst [vmem:[#allocation2 + $0x8] sm:$0xff] %v370
          %403 = vst [vmem:[#allocation2 + $0x10] sm:$0xff] %v371
          %404 = vst [vmem:[#allocation2 + $0x18] sm:$0xff] %v372
          %405 = vst [vmem:[#allocation2 + $0x20] sm:$0xff] %v373
          %406 = vst [vmem:[#allocation2 + $0x28] sm:$0xff] %v374
          %407 = vst [vmem:[#allocation2 + $0x30] sm:$0xff] %v375
          %408 = vst [vmem:[#allocation2 + $0x38] sm:$0xff] %v376
          %409 = vst [vmem:[#allocation2 + $0x40] sm:$0xff] %v377
          %410 = vst [vmem:[#allocation2 + $0x48] sm:$0xff] %v378
          %411 = vst [vmem:[#allocation2 + $0x50] sm:$0xff] %v379
          %412 = vst [vmem:[#allocation2 + $0x58] sm:$0xff] %v380
          %413 = vst [vmem:[#allocation2 + $0x60] sm:$0xff] %v381
          %414 = vst [vmem:[#allocation2 + $0x68] sm:$0xff] %v382
          %415 = vst [vmem:[#allocation2 + $0x70] sm:$0xff] %v383
          %416 = vst [vmem:[#allocation2 + $0x78] sm:$0xff] %v384
          %417 = vst [vmem:[#allocation2 + $0x80] sm:$0xff] %v385
          %418 = vst [vmem:[#allocation2 + $0x88] sm:$0xff] %v386
          %419 = vst [vmem:[#allocation2 + $0x90] sm:$0xff] %v387
          %420 = vst [vmem:[#allocation2 + $0x98] sm:$0xff] %v388
          %421 = vst [vmem:[#allocation2 + $0xa0] sm:$0xff] %v389
          %422 = vst [vmem:[#allocation2 + $0xa8] sm:$0xff] %v390
          %423 = vst [vmem:[#allocation2 + $0xb0] sm:$0xff] %v391
          %424 = vst [vmem:[#allocation2 + $0xb8] sm:$0xff] %v392
          %425 = vst [vmem:[#allocation2 + $0xc0] sm:$0xff] %v393
          %426 = vst [vmem:[#allocation2 + $0xc8] sm:$0xff] %v394
          %427 = vst [vmem:[#allocation2 + $0xd0] sm:$0xff] %v395
          %428 = vst [vmem:[#allocation2 + $0xd8] sm:$0xff] %v396
          %429 = vst [vmem:[#allocation2 + $0xe0] sm:$0xff] %v397
          %430 = vst [vmem:[#allocation2 + $0xe8] sm:$0xff] %v398
          %431 = vst [vmem:[#allocation2 + $0xf0] sm:$0xff] %v399
          %432 = vst [vmem:[#allocation2 + $0xf8] sm:$0xff] %v400
        $region52: #{tpu_custom_call.1} parent=39 // pred_fallthru
          _
        %p433 = scmp.eq.s32.totalorder %s25, 1
        // Predicated region
        $region53: #{tpu_custom_call.1} parent=39 // pred_check
          %p434 = pneg %p433
        $region54: #{tpu_custom_call.1} parent=39 // pred_check_branch
          %436 = sbr.rel (%p434) target = $region56
        $region55: #{tpu_custom_call.1} parent=39 // pred_region
          %v437 = vld [vmem:[#allocation2] sm:$0xff]
          %v438 = vld [vmem:[#allocation2 + $0x8] sm:$0xff]
          %v439 = vld [vmem:[#allocation2 + $0x10] sm:$0xff]
          %v440 = vld [vmem:[#allocation2 + $0x18] sm:$0xff]
          %v441 = vld [vmem:[#allocation2 + $0x20] sm:$0xff]
          %v442 = vld [vmem:[#allocation2 + $0x28] sm:$0xff]
          %v443 = vld [vmem:[#allocation2 + $0x30] sm:$0xff]
          %v444 = vld [vmem:[#allocation2 + $0x38] sm:$0xff]
          %v445 = vld [vmem:[#allocation2 + $0x40] sm:$0xff]
          %v446 = vld [vmem:[#allocation2 + $0x48] sm:$0xff]
          %v447 = vld [vmem:[#allocation2 + $0x50] sm:$0xff]
          %v448 = vld [vmem:[#allocation2 + $0x58] sm:$0xff]
          %v449 = vld [vmem:[#allocation2 + $0x60] sm:$0xff]
          %v450 = vld [vmem:[#allocation2 + $0x68] sm:$0xff]
          %v451 = vld [vmem:[#allocation2 + $0x70] sm:$0xff]
          %v452 = vld [vmem:[#allocation2 + $0x78] sm:$0xff]
          %v453 = vld [vmem:[#allocation2 + $0x80] sm:$0xff]
          %v454 = vld [vmem:[#allocation2 + $0x88] sm:$0xff]
          %v455 = vld [vmem:[#allocation2 + $0x90] sm:$0xff]
          %v456 = vld [vmem:[#allocation2 + $0x98] sm:$0xff]
          %v457 = vld [vmem:[#allocation2 + $0xa0] sm:$0xff]
          %v458 = vld [vmem:[#allocation2 + $0xa8] sm:$0xff]
          %v459 = vld [vmem:[#allocation2 + $0xb0] sm:$0xff]
          %v460 = vld [vmem:[#allocation2 + $0xb8] sm:$0xff]
          %v461 = vld [vmem:[#allocation2 + $0xc0] sm:$0xff]
          %v462 = vld [vmem:[#allocation2 + $0xc8] sm:$0xff]
          %v463 = vld [vmem:[#allocation2 + $0xd0] sm:$0xff]
          %v464 = vld [vmem:[#allocation2 + $0xd8] sm:$0xff]
          %v465 = vld [vmem:[#allocation2 + $0xe0] sm:$0xff]
          %v466 = vld [vmem:[#allocation2 + $0xe8] sm:$0xff]
          %v467 = vld [vmem:[#allocation2 + $0xf0] sm:$0xff]
          %v468 = vld [vmem:[#allocation2 + $0xf8] sm:$0xff]
          %469 = vadd.xlane.f32.xlu0 %v437
          %v470 = vpop.xlane.xlu0 %469
          %471 = vadd.xlane.f32.xlu0 %v438
          %v472 = vpop.xlane.xlu0 %471
          %473 = vadd.xlane.f32.xlu0 %v439
          %v474 = vpop.xlane.xlu0 %473
          %475 = vadd.xlane.f32.xlu0 %v440
          %v476 = vpop.xlane.xlu0 %475
          %477 = vadd.xlane.f32.xlu0 %v441
          %v478 = vpop.xlane.xlu0 %477
          %479 = vadd.xlane.f32.xlu0 %v442
          %v480 = vpop.xlane.xlu0 %479
          %481 = vadd.xlane.f32.xlu0 %v443
          %v482 = vpop.xlane.xlu0 %481
          %483 = vadd.xlane.f32.xlu0 %v444
          %v484 = vpop.xlane.xlu0 %483
          %485 = vadd.xlane.f32.xlu0 %v445
          %v486 = vpop.xlane.xlu0 %485
          %487 = vadd.xlane.f32.xlu0 %v446
          %v488 = vpop.xlane.xlu0 %487
          %489 = vadd.xlane.f32.xlu0 %v447
          %v490 = vpop.xlane.xlu0 %489
          %491 = vadd.xlane.f32.xlu0 %v448
          %v492 = vpop.xlane.xlu0 %491
          %493 = vadd.xlane.f32.xlu0 %v449
          %v494 = vpop.xlane.xlu0 %493
          %495 = vadd.xlane.f32.xlu0 %v450
          %v496 = vpop.xlane.xlu0 %495
          %497 = vadd.xlane.f32.xlu0 %v451
          %v498 = vpop.xlane.xlu0 %497
          %499 = vadd.xlane.f32.xlu0 %v452
          %v500 = vpop.xlane.xlu0 %499
          %501 = vadd.xlane.f32.xlu0 %v453
          %v502 = vpop.xlane.xlu0 %501
          %503 = vadd.xlane.f32.xlu0 %v454
          %v504 = vpop.xlane.xlu0 %503
          %505 = vadd.xlane.f32.xlu0 %v455
          %v506 = vpop.xlane.xlu0 %505
          %507 = vadd.xlane.f32.xlu0 %v456
          %v508 = vpop.xlane.xlu0 %507
          %509 = vadd.xlane.f32.xlu0 %v457
          %v510 = vpop.xlane.xlu0 %509
          %511 = vadd.xlane.f32.xlu0 %v458
          %v512 = vpop.xlane.xlu0 %511
          %513 = vadd.xlane.f32.xlu0 %v459
          %v514 = vpop.xlane.xlu0 %513
          %515 = vadd.xlane.f32.xlu0 %v460
          %v516 = vpop.xlane.xlu0 %515
          %517 = vadd.xlane.f32.xlu0 %v461
          %v518 = vpop.xlane.xlu0 %517
          %519 = vadd.xlane.f32.xlu0 %v462
          %v520 = vpop.xlane.xlu0 %519
          %521 = vadd.xlane.f32.xlu0 %v463
          %v522 = vpop.xlane.xlu0 %521
          %523 = vadd.xlane.f32.xlu0 %v464
          %v524 = vpop.xlane.xlu0 %523
          %525 = vadd.xlane.f32.xlu0 %v465
          %v526 = vpop.xlane.xlu0 %525
          %527 = vadd.xlane.f32.xlu0 %v466
          %v528 = vpop.xlane.xlu0 %527
          %529 = vadd.xlane.f32.xlu0 %v467
          %v530 = vpop.xlane.xlu0 %529
          %531 = vadd.xlane.f32.xlu0 %v468
          %v532 = vpop.xlane.xlu0 %531
          %v533 = vld [vmem:[%s1] sm:$0xff]
          %v534 = vld [vmem:[%s1 + $0x8] sm:$0xff]
          %v535 = vld [vmem:[%s1 + $0x10] sm:$0xff]
          %v536 = vld [vmem:[%s1 + $0x18] sm:$0xff]
          %v537 = vld [vmem:[%s2] sm:$0x1]
          %v539 = vlaneseq
          %v540 = vshrl.u32 %v539, 7
          %v541 = vsub.s32 0, %v540
          %v542 = vrot.slane %v537, %v541
          %v576 = vlaneseq
          %v577 = vand.u32 %v576, 127
          %v578 = vlaneseq
          %v579 = vshrl.u32 %v578, 7
          %v580 = vsub.s32 %v577, %v579
          %v581 = vrot.slane %v470, %v580
          %v582 = vadd.s32 %v577, 4294967288
          %v583 = vlaneseq
          %v584 = vshrl.u32 %v583, 7
          %v585 = vsub.s32 %v582, %v584
          %v586 = vrot.slane %v472, %v585
          %vm587 = vcmask 130112
          %v588 = vsel %vm587, %v586, %v581
          %v589 = vadd.s32 %v577, 4294967280
          %v590 = vlaneseq
          %v591 = vshrl.u32 %v590, 7
          %v592 = vsub.s32 %v589, %v591
          %v593 = vrot.slane %v474, %v592
          %vm594 = vcmask 195712
          %v595 = vsel %vm594, %v593, %v588
          %v596 = vadd.s32 %v577, 4294967272
          %v597 = vlaneseq
          %v598 = vshrl.u32 %v597, 7
          %v599 = vsub.s32 %v596, %v598
          %v600 = vrot.slane %v476, %v599
          %vm601 = vcmask 261312
          %v602 = vsel %vm601, %v600, %v595
          %v603 = vlaneseq
          %v604 = vshrl.u32 %v603, 7
          %v605 = vsub.s32 %v577, %v604
          %v606 = vrot.slane %v478, %v605
          %v607 = vlaneseq
          %v608 = vshrl.u32 %v607, 7
          %v609 = vsub.s32 %v582, %v608
          %v610 = vrot.slane %v480, %v609
          %v611 = vsel %vm587, %v610, %v606
          %v612 = vlaneseq
          %v613 = vshrl.u32 %v612, 7
          %v614 = vsub.s32 %v589, %v613
          %v615 = vrot.slane %v482, %v614
          %v616 = vsel %vm594, %v615, %v611
          %v617 = vlaneseq
          %v618 = vshrl.u32 %v617, 7
          %v619 = vsub.s32 %v596, %v618
          %v620 = vrot.slane %v484, %v619
          %v621 = vsel %vm601, %v620, %v616
          %v622 = vlaneseq
          %v623 = vshrl.u32 %v622, 7
          %v624 = vsub.s32 %v577, %v623
          %v625 = vrot.slane %v486, %v624
          %v626 = vlaneseq
          %v627 = vshrl.u32 %v626, 7
          %v628 = vsub.s32 %v582, %v627
          %v629 = vrot.slane %v488, %v628
          %v630 = vsel %vm587, %v629, %v625
          %v631 = vlaneseq
          %v632 = vshrl.u32 %v631, 7
          %v633 = vsub.s32 %v589, %v632
          %v634 = vrot.slane %v490, %v633
          %v635 = vsel %vm594, %v634, %v630
          %v636 = vlaneseq
          %v637 = vshrl.u32 %v636, 7
          %v638 = vsub.s32 %v596, %v637
          %v639 = vrot.slane %v492, %v638
          %v640 = vsel %vm601, %v639, %v635
          %v641 = vlaneseq
          %v642 = vshrl.u32 %v641, 7
          %v643 = vsub.s32 %v577, %v642
          %v644 = vrot.slane %v494, %v643
          %v645 = vlaneseq
          %v646 = vshrl.u32 %v645, 7
          %v647 = vsub.s32 %v582, %v646
          %v648 = vrot.slane %v496, %v647
          %v649 = vsel %vm587, %v648, %v644
          %v650 = vlaneseq
          %v651 = vshrl.u32 %v650, 7
          %v652 = vsub.s32 %v589, %v651
          %v653 = vrot.slane %v498, %v652
          %v654 = vsel %vm594, %v653, %v649
          %v655 = vlaneseq
          %v656 = vshrl.u32 %v655, 7
          %v657 = vsub.s32 %v596, %v656
          %v658 = vrot.slane %v500, %v657
          %v659 = vsel %vm601, %v658, %v654
          %v660 = vlaneseq
          %v661 = vshrl.u32 %v660, 7
          %v662 = vsub.s32 %v577, %v661
          %v663 = vrot.slane %v502, %v662
          %v664 = vlaneseq
          %v665 = vshrl.u32 %v664, 7
          %v666 = vsub.s32 %v582, %v665
          %v667 = vrot.slane %v504, %v666
          %v668 = vsel %vm587, %v667, %v663
          %v669 = vlaneseq
          %v670 = vshrl.u32 %v669, 7
          %v671 = vsub.s32 %v589, %v670
          %v672 = vrot.slane %v506, %v671
          %v673 = vsel %vm594, %v672, %v668
          %v674 = vlaneseq
          %v675 = vshrl.u32 %v674, 7
          %v676 = vsub.s32 %v596, %v675
          %v677 = vrot.slane %v508, %v676
          %v678 = vsel %vm601, %v677, %v673
          %v679 = vlaneseq
          %v680 = vshrl.u32 %v679, 7
          %v681 = vsub.s32 %v577, %v680
          %v682 = vrot.slane %v510, %v681
          %v683 = vlaneseq
          %v684 = vshrl.u32 %v683, 7
          %v685 = vsub.s32 %v582, %v684
          %v686 = vrot.slane %v512, %v685
          %v687 = vsel %vm587, %v686, %v682
          %v688 = vlaneseq
          %v689 = vshrl.u32 %v688, 7
          %v690 = vsub.s32 %v589, %v689
          %v691 = vrot.slane %v514, %v690
          %v692 = vsel %vm594, %v691, %v687
          %v693 = vlaneseq
          %v694 = vshrl.u32 %v693, 7
          %v695 = vsub.s32 %v596, %v694
          %v696 = vrot.slane %v516, %v695
          %v697 = vsel %vm601, %v696, %v692
          %v698 = vlaneseq
          %v699 = vshrl.u32 %v698, 7
          %v700 = vsub.s32 %v577, %v699
          %v701 = vrot.slane %v518, %v700
          %v702 = vlaneseq
          %v703 = vshrl.u32 %v702, 7
          %v704 = vsub.s32 %v582, %v703
          %v705 = vrot.slane %v520, %v704
          %v706 = vsel %vm587, %v705, %v701
          %v707 = vlaneseq
          %v708 = vshrl.u32 %v707, 7
          %v709 = vsub.s32 %v589, %v708
          %v710 = vrot.slane %v522, %v709
          %v711 = vsel %vm594, %v710, %v706
          %v712 = vlaneseq
          %v713 = vshrl.u32 %v712, 7
          %v714 = vsub.s32 %v596, %v713
          %v715 = vrot.slane %v524, %v714
          %v716 = vsel %vm601, %v715, %v711
          %v717 = vlaneseq
          %v718 = vshrl.u32 %v717, 7
          %v719 = vsub.s32 %v577, %v718
          %v720 = vrot.slane %v526, %v719
          %v721 = vlaneseq
          %v722 = vshrl.u32 %v721, 7
          %v723 = vsub.s32 %v582, %v722
          %v724 = vrot.slane %v528, %v723
          %v725 = vsel %vm587, %v724, %v720
          %v726 = vlaneseq
          %v727 = vshrl.u32 %v726, 7
          %v728 = vsub.s32 %v589, %v727
          %v729 = vrot.slane %v530, %v728
          %v730 = vsel %vm594, %v729, %v725
          %v731 = vlaneseq
          %v732 = vshrl.u32 %v731, 7
          %v733 = vsub.s32 %v596, %v732
          %v734 = vrot.slane %v532, %v733
          %v735 = vsel %vm601, %v734, %v730
          %vm736 = vcmask 1041409
          %v737 = vsel %vm736, %v621, %v602
          %vm738 = vcmask 1042434
          %v739 = vsel %vm738, %v640, %v737
          %vm740 = vcmask 1043459
          %v741 = vsel %vm740, %v659, %v739
          %vm742 = vcmask 1044484
          %v743 = vsel %vm742, %v678, %v741
          %vm744 = vcmask 1045509
          %v745 = vsel %vm744, %v697, %v743
          %vm746 = vcmask 1046534
          %v747 = vsel %vm746, %v716, %v745
          %vm748 = vcmask 1047559
          %v749 = vsel %vm748, %v735, %v747
          %vm750 = vcmask 261120
          %v751 = vsel %vm750, %v749, 0
          %753 = vmatprep.subr.mxu0 0.0
          %754 = vmatpush1.msra.mxu0 0.0
          %755 = vmatprep.subr.mxu0 0.0
          %756 = vmatpush1.msra.mxu0 0.0
          %757 = vmatprep.subr.mxu0 0.0
          %758 = vmatpush1.msra.mxu0 0.0
          %759 = vmatprep.subr.mxu0 0.0
          %760 = vmatpush1.msra.mxu0 0.0
          %761 = vmatprep.subr.mxu0 0.0
          %762 = vmatpush1.msra.mxu0 0.0
          %763 = vmatprep.subr.mxu0 0.0
          %764 = vmatpush1.msra.mxu0 0.0
          %765 = vmatprep.subr.mxu0 0.0
          %766 = vmatpush1.msra.mxu0 0.0
          %767 = vmatprep.subr.mxu0 0.0
          %768 = vmatpush1.msra.mxu0 0.0
          %769 = vmatprep.subr.mxu0 0.0
          %770 = vmatpush1.msra.mxu0 0.0
          %771 = vmatprep.subr.mxu0 0.0
          %772 = vmatpush1.msra.mxu0 0.0
          %773 = vmatprep.subr.mxu0 0.0
          %774 = vmatpush1.msra.mxu0 0.0
          %775 = vmatprep.subr.mxu0 0.0
          %776 = vmatpush1.msra.mxu0 0.0
          %777 = vmatprep.subr.mxu0 0.0
          %778 = vmatpush1.msra.mxu0 %v536
          %779 = vmatprep.subr.mxu0 0.0
          %780 = vmatpush1.msra.mxu0 %v535
          %781 = vmatprep.subr.mxu0 0.0
          %782 = vmatpush1.msra.mxu0 %v534
          %783 = vmatprep.subr.mxu0 0.0
          %784 = vmatpush1.msra.mxu0 %v533
          %785 = vmatprep.subr.mxu0 0.0
          %786 = vmatpush2.msra.mxu0 0.0
          %787 = vmatprep.subr.mxu0 0.0
          %788 = vmatpush2.msra.mxu0 0.0
          %789 = vmatprep.subr.mxu0 0.0
          %790 = vmatpush2.msra.mxu0 0.0
          %791 = vmatprep.subr.mxu0 0.0
          %792 = vmatpush2.msra.mxu0 0.0
          %793 = vmatprep.subr.mxu0 0.0
          %794 = vmatpush2.msra.mxu0 0.0
          %795 = vmatprep.subr.mxu0 0.0
          %796 = vmatpush2.msra.mxu0 0.0
          %797 = vmatprep.subr.mxu0 0.0
          %798 = vmatpush2.msra.mxu0 0.0
          %799 = vmatprep.subr.mxu0 0.0
          %800 = vmatpush2.msra.mxu0 0.0
          %801 = vmatprep.subr.mxu0 0.0
          %802 = vmatpush2.msra.mxu0 0.0
          %803 = vmatprep.subr.mxu0 0.0
          %804 = vmatpush2.msra.mxu0 0.0
          %805 = vmatprep.subr.mxu0 0.0
          %806 = vmatpush2.msra.mxu0 0.0
          %807 = vmatprep.subr.mxu0 0.0
          %808 = vmatpush2.msra.mxu0 0.0
          %809 = vmatprep.subr.mxu0 0.0
          %810 = vmatpush2.msra.mxu0 0.0
          %811 = vmatprep.subr.mxu0 0.0
          %812 = vmatpush2.msra.mxu0 0.0
          %813 = vmatprep.subr.mxu0 0.0
          %814 = vmatpush2.msra.mxu0 0.0
          %815 = vmatprep.subr.mxu0 0.0
          %816 = vmatpush2.msra.mxu0 0.0
          %817 = vmatprep.mubr.f32.mxu0 0.0
          %818 = vmatmul.mubr.f32.gmra.mxu0 %v751
          %v819 = vpop.f32.mrf.mxu0
          %v820 = vadd.f32 %v542, %v819
          %v821 = vpop.f32.mrf.mxu0
          %822 = vdwg.mxu0
          %v823 = vmax.f32 %v820, 0.0
          %v824 = vld [vmem:[%s3] sm:$0xff]
          %v825 = vld [vmem:[%s4] sm:$0x1]
          %v827 = vlaneseq
          %v828 = vshrl.u32 %v827, 7
          %v829 = vsub.s32 0, %v828
          %v830 = vrot.slane %v825, %v829
          %vm832 = vcmask 64512
          %v834 = vsel %vm832, %v823, 0
          %836 = vmatprep.subr.mxu0 0.0
          %837 = vmatpush1.msra.mxu0 0.0
          %838 = vmatprep.subr.mxu0 0.0
          %839 = vmatpush1.msra.mxu0 0.0
          %840 = vmatprep.subr.mxu0 0.0
          %841 = vmatpush1.msra.mxu0 0.0
          %842 = vmatprep.subr.mxu0 0.0
          %843 = vmatpush1.msra.mxu0 0.0
          %844 = vmatprep.subr.mxu0 0.0
          %845 = vmatpush1.msra.mxu0 0.0
          %846 = vmatprep.subr.mxu0 0.0
          %847 = vmatpush1.msra.mxu0 0.0
          %848 = vmatprep.subr.mxu0 0.0
          %849 = vmatpush1.msra.mxu0 0.0
          %850 = vmatprep.subr.mxu0 0.0
          %851 = vmatpush1.msra.mxu0 0.0
          %852 = vmatprep.subr.mxu0 0.0
          %853 = vmatpush1.msra.mxu0 0.0
          %854 = vmatprep.subr.mxu0 0.0
          %855 = vmatpush1.msra.mxu0 0.0
          %856 = vmatprep.subr.mxu0 0.0
          %857 = vmatpush1.msra.mxu0 0.0
          %858 = vmatprep.subr.mxu0 0.0
          %859 = vmatpush1.msra.mxu0 0.0
          %860 = vmatprep.subr.mxu0 0.0
          %861 = vmatpush1.msra.mxu0 0.0
          %862 = vmatprep.subr.mxu0 0.0
          %863 = vmatpush1.msra.mxu0 0.0
          %864 = vmatprep.subr.mxu0 0.0
          %865 = vmatpush1.msra.mxu0 0.0
          %866 = vmatprep.subr.mxu0 0.0
          %867 = vmatpush1.msra.mxu0 %v824
          %868 = vmatprep.subr.mxu0 0.0
          %869 = vmatpush2.msra.mxu0 0.0
          %870 = vmatprep.subr.mxu0 0.0
          %871 = vmatpush2.msra.mxu0 0.0
          %872 = vmatprep.subr.mxu0 0.0
          %873 = vmatpush2.msra.mxu0 0.0
          %874 = vmatprep.subr.mxu0 0.0
          %875 = vmatpush2.msra.mxu0 0.0
          %876 = vmatprep.subr.mxu0 0.0
          %877 = vmatpush2.msra.mxu0 0.0
          %878 = vmatprep.subr.mxu0 0.0
          %879 = vmatpush2.msra.mxu0 0.0
          %880 = vmatprep.subr.mxu0 0.0
          %881 = vmatpush2.msra.mxu0 0.0
          %882 = vmatprep.subr.mxu0 0.0
          %883 = vmatpush2.msra.mxu0 0.0
          %884 = vmatprep.subr.mxu0 0.0
          %885 = vmatpush2.msra.mxu0 0.0
          %886 = vmatprep.subr.mxu0 0.0
          %887 = vmatpush2.msra.mxu0 0.0
          %888 = vmatprep.subr.mxu0 0.0
          %889 = vmatpush2.msra.mxu0 0.0
          %890 = vmatprep.subr.mxu0 0.0
          %891 = vmatpush2.msra.mxu0 0.0
          %892 = vmatprep.subr.mxu0 0.0
          %893 = vmatpush2.msra.mxu0 0.0
          %894 = vmatprep.subr.mxu0 0.0
          %895 = vmatpush2.msra.mxu0 0.0
          %896 = vmatprep.subr.mxu0 0.0
          %897 = vmatpush2.msra.mxu0 0.0
          %898 = vmatprep.subr.mxu0 0.0
          %899 = vmatpush2.msra.mxu0 0.0
          %900 = vmatprep.mubr.f32.mxu0 0.0
          %901 = vmatmul.mubr.f32.gmra.mxu0 %v834
          %v902 = vpop.f32.mrf.mxu0
          %v903 = vadd.f32 %v830, %v902
          %v904 = vpop.f32.mrf.mxu0
          %905 = vdwg.mxu0
          %vm906 = vcmask 31744
          %v907 = vsel %vm906, %v903, -inf
          %908 = vmax.xlane.f32.xlu0 %v907
          %v909 = vpop.xlane.xlu0 %908
          %v910 = vsub.f32 %v903, %v909
          %v911 = vmul.f32 %v910, 1.442695
          %v912 = vpow.pop %v911
          %v913 = vsel %vm906, %v912, 0.0
          %914 = vadd.xlane.f32.xlu0 %v913
          %v915 = vpop.xlane.xlu0 %914
          %v916 = vrcp.pop %v915
          %v917 = vmul.f32 %v912, %v916
          %918 = vst.msk [vmem:[#allocation6] sm:$0xff] %vm906, %v917
        $region56: #{tpu_custom_call.1} parent=39 // pred_fallthru
          _
        // Predicated region
        $region57: #{tpu_custom_call.1} parent=39 // pred_check
          %p919 = pneg %p162
        $region58: #{tpu_custom_call.1} parent=39 // pred_check_branch
          %921 = sbr.rel (%p919) target = $region60
        $region59: #{tpu_custom_call.1} parent=39 // pred_region
          %s922 = smul.u32 4, %s24
          %s923 = ssub.s32 1, %s922
          %s924 = smul.u32 32, %s923
          %s926 = ssub.s32 128, %s924
          %927 = vsyncadd [#allocation5], %s926
          %p928 = scmp.ne.s32.totalorder 0, %s924
          %s929 = smul.addr %s922, 32
          %s930 = scalar_lea.hbm %s5, %s929
          %s931 = smul.u32 2, %s923
          %s932 = sshll.u32 [#allocation6], 4
          %s933 = int_to_ptr.vmem [resolvable:$true] %s932
          %s934 = sshll.u32 %s931, 4
          %938 = dma.vmem_to_hbm [thread:$0]  (%p928), %s933, %s934, %s930, [#allocation5], 32, 32, 2
        $region60: #{tpu_custom_call.1} parent=39 // pred_fallthru
          _
        // Predicated region
        $region61: #{tpu_custom_call.1} parent=39 // pred_check
          %p939 = pneg %p162
        $region62: #{tpu_custom_call.1} parent=39 // pred_check_branch
          %941 = sbr.rel (%p939) target = $region64
        $region63: #{tpu_custom_call.1} parent=39 // pred_region
          %942 = dma.done [#allocation5], 128
        $region64: #{tpu_custom_call.1} parent=39 // pred_fallthru
          _
      $region40: #{tpu_custom_call.1} parent=5 // pred_fallthru
        _
      %p943 = scmp.le.s32.totalorder 2, %s15
      // Predicated region
      $region65: #{tpu_custom_call.1} parent=5 // pred_check
        %p944 = pneg %p943
      $region66: #{tpu_custom_call.1} parent=5 // pred_check_branch
        %946 = sbr.rel (%p944) target = $region68
      $region67: #{tpu_custom_call.1} parent=5 // pred_region
        %s947 = ssub.s32 %s15, 2
      $region68: #{tpu_custom_call.1} parent=5 // pred_fallthru
        _
    $region6: #{tpu_custom_call.1} parent=1 // loop_footer
      %s19 = sadd.s32 1, %s15
    $region7: #{tpu_custom_call.1} parent=1 // loop_footer_branch
      %14 = sbr.rel target = $region3
    $region8: #{tpu_custom_call.1} parent=1 // loop_exit
      _
    %948 = vsyncpa [#allocation4], 1
    %s949 = scalar_lea.sflag [#allocation4], 1
    %950 = vsyncpa %s949, 1
    %951 = vsyncpa [#allocation5], 1
    %s952 = scalar_lea.sflag [#allocation5], 1
    %953 = vsyncpa %s952, 1

</llo_original>
